<compile_context>
chip_gen: v6e
topology: v6e:2x2x1
jax: 0.10.0
libtpu: 0.0.40
codegen_flags: <defaults>
</compile_context>

<pallas_src>
import functools

import jax
import jax.numpy as jnp
import numpy as np
from jax.experimental import pallas as pl
from jax.experimental.pallas import tpu as pltpu

_MIB = 1024 * 1024


def _vmem_limit(block_bytes):
    # Raise the scoped-VMEM limit above v5e's 16 MiB default; give 2x headroom
    # over the estimated working set but stay within v7x's 64 MiB physical VMEM.
    return int(min(max(2 * block_bytes, 32 * _MIB), 64 * _MIB))


def _out_proj_kernel(v_ref, w_ref, o_ref):
    # output = value @ (Wv^T @ Wo^T); batch folded into rows host-side so one
    # grid step feeds the MXU with all (B*Lv) rows.
    o_ref[...] = jnp.dot(v_ref[...], w_ref[...],
                         preferred_element_type=jnp.float32).astype(o_ref.dtype)


def _attn_kernel(q_ref, k_ref, wqk_ref, attn_ref, *, inv_num_heads, compute_dtype):
    # Per (batch, Lq-tile) block; batch dim squeezed out of all refs.
    q = q_ref[...]        # [tq, Dk]
    k = k_ref[...]        # [Lk, Dk]
    wqk = wqk_ref[...]    # [Dk, Dk]  = scale * Wq_h^T @ Wk_h (fused host-side)

    t = jnp.dot(q, wqk, preferred_element_type=jnp.float32)          # [tq, Dk]
    if compute_dtype is not None:
        # Keep the QK^T matmul at the native bf16 MXU rate (f32 accumulate).
        t = t.astype(compute_dtype)
    s = jax.lax.dot_general(t, k, (((1,), (1,)), ((), ())),
                            preferred_element_type=jnp.float32)      # [tq, Lk]

    s = s - jnp.max(s, axis=-1, keepdims=True)
    e = jnp.exp(s)
    denom = jnp.sum(e, axis=-1, keepdims=True)
    # Exact divide (approx reciprocal previously cost ~2.7e-3 rel. error).
    # TODO(synk): attention dropout is p=0.0 (identity); p>0 would need pltpu.prng_*.
    attn_ref[...] = ((e * inv_num_heads) / denom).astype(attn_ref.dtype)


def multi_head_attention(key, value, query, wq, wk, wv, wo, num_heads,
                         *, compute_dtype=None, attn_dtype=jnp.float32,
                         out_dtype=jnp.float32, block_q=256, block_m=512):
    """Returns (output, attn_scores/num_heads) matching the torch module."""
    B, Lk, Dk = key.shape
    _, Lv, Dv = value.shape
    _, Lq, _ = query.shape
    Dout = wo.shape[0]
    if Dk % num_heads != 0:
        raise ValueError(f"key_depth={Dk} not divisible by num_heads={num_heads}")
    head_dim = Dk // num_heads
    lo = (num_heads - 1) * head_dim
    scale = head_dim ** (-0.5)

    # ---- Host-side (one-off) weight prep ------------------------------------
    # Value path: out = v @ Wv^T @ Wo^T  -> single fused matrix.
    w_fused = wv.T @ wo.T                               # [Dv, Dout]
    # Last head's Q/K projections fused with the scale:
    #   s = (scale * q @ Wq_h^T) @ (k @ Wk_h^T)^T = q @ W_qk @ k^T
    wq_t_h = wq.T[:, lo:lo + head_dim]                  # [Dk, head_dim]
    wk_t_h = wk.T[:, lo:lo + head_dim]                  # [Dk, head_dim]
    w_qk = (scale * wq_t_h) @ wk_t_h.T                  # [Dk, Dk]

    # Hoisted casts: bf16 (or other compute dtype) is what gets DMA'd.
    act_dtype = key.dtype
    if compute_dtype is not None:
        key = key.astype(compute_dtype)
        query = query.astype(compute_dtype)
        value = value.astype(compute_dtype)
        w_fused = w_fused.astype(compute_dtype)
        w_qk = w_qk.astype(compute_dtype)
        act_dtype = jnp.dtype(compute_dtype)
    act_bytes = jnp.dtype(act_dtype).itemsize
    out_bytes_e = jnp.dtype(out_dtype).itemsize
    attn_bytes_e = jnp.dtype(attn_dtype).itemsize

    # ---- 1) Output projection GEMM: (B*Lv, Dv) @ (Dv, Dout) ------------------
    M = B * Lv
    v2d = value.reshape(M, Dv)
    tm = M if M <= block_m else block_m
    grid_m = pl.cdiv(M, tm)

    proj_cost = pl.CostEstimate(
        flops=2 * M * Dv * Dout,
        transcendentals=0,
        bytes_accessed=act_bytes * (M * Dv + Dv * Dout) + out_bytes_e * M * Dout)
    proj_vmem = 2 * (tm * Dv * act_bytes + tm * Dout * out_bytes_e) \
        + 2 * Dv * Dout * act_bytes

    out2d = pl.pallas_call(
        _out_proj_kernel,
        out_shape=jax.ShapeDtypeStruct((M, Dout), out_dtype),
        grid=(grid_m,),
        in_specs=[
            pl.BlockSpec((tm, Dv), lambda i: (i, 0)),
            pl.BlockSpec((Dv, Dout), lambda i: (0, 0)),   # resident fused weight
        ],
        out_specs=pl.BlockSpec((tm, Dout), lambda i: (i, 0)),
        compiler_params=pltpu.CompilerParams(
            dimension_semantics=("parallel",),
            vmem_limit_bytes=_vmem_limit(proj_vmem)),
        cost_estimate=proj_cost,
    )(v2d, w_fused)
    output = out2d.reshape(B, Lv, Dout)

    # ---- 2) Last-head attention map, tiled over (batch, Lq tiles) ------------
    tq = Lq if Lq <= block_q else block_q
    grid_q = pl.cdiv(Lq, tq)

    attn_cost = pl.CostEstimate(
        flops=B * (2 * Lq * Dk * Dk + 2 * Lq * Lk * Dk),
        transcendentals=B * Lq * Lk,
        bytes_accessed=(act_bytes * B * (Lq * Dk + Lk * Dk)
                        + act_bytes * Dk * Dk
                        + attn_bytes_e * B * Lq * Lk))
    attn_vmem = (2 * (tq * Dk + Lk * Dk) * act_bytes      # q/k double buffers
                 + 2 * tq * Lk * attn_bytes_e             # attn out double buffer
                 + 2 * Dk * Dk * act_bytes                # resident W_qk
                 + 4 * tq * Lk * 4)                       # s/e/denom temporaries

    kernel = functools.partial(_attn_kernel, inv_num_heads=1.0 / num_heads,
                               compute_dtype=compute_dtype)
    attn = pl.pallas_call(
        kernel,
        out_shape=jax.ShapeDtypeStruct((B, Lq, Lk), attn_dtype),
        grid=(B, grid_q),
        in_specs=[
            pl.BlockSpec((None, tq, Dk), lambda b, i: (b, i, 0)),   # query tile
            pl.BlockSpec((None, Lk, Dk), lambda b, i: (b, 0, 0)),   # full keys
            pl.BlockSpec((Dk, Dk), lambda b, i: (0, 0)),            # W_qk (resident)
        ],
        out_specs=pl.BlockSpec((None, tq, Lk), lambda b, i: (b, i, 0)),
        compiler_params=pltpu.CompilerParams(
            dimension_semantics=("parallel", "parallel"),
            vmem_limit_bytes=_vmem_limit(attn_vmem)),
        cost_estimate=attn_cost,
    )(query, key, w_qk)

    # TODO(synk): self.layer_norm is defined in the torch module but never used
    # in forward, so it is intentionally not implemented here.
    return output, attn


if __name__ == "__main__":
    B, L = 2, 8
    key_depth, value_depth, output_depth, num_heads = 32, 32, 32, 8
    head_dim = key_depth // num_heads

    rng = jax.random.PRNGKey(0)
    ks = jax.random.split(rng, 7)
    key_in = jax.random.normal(ks[0], (B, L, key_depth), jnp.float32)
    value_in = jax.random.normal(ks[1], (B, L, value_depth), jnp.float32)
    query_in = jax.random.normal(ks[2], (B, L, key_depth), jnp.float32)

    # Deterministic nn.Linear-style weights: shape [out, in], U(-1/sqrt(in), 1/sqrt(in)).
    def init_w(k, out_d, in_d):
        lim = 1.0 / np.sqrt(in_d)
        return jax.random.uniform(k, (out_d, in_d), jnp.float32, -lim, lim)

    wq = init_w(ks[3], key_depth, key_depth)
    wk = init_w(ks[4], key_depth, key_depth)
    wv = init_w(ks[5], value_depth, value_depth)
    wo = init_w(ks[6], output_depth, value_depth)

    out, attn = multi_head_attention(key_in, value_in, query_in,
                                     wq, wk, wv, wo, num_heads)
    out, attn = jax.block_until_ready((out, attn))

    # Pure-JAX reference (exact reproduction of the torch forward semantics).
    k_p = key_in @ wk.T
    v_p = value_in @ wv.T
    q_p = (query_in @ wq.T) * head_dim ** (-0.5)
    lo = (num_heads - 1) * head_dim
    s_ref = jnp.einsum('bld,bmd->blm',
                       q_p[..., lo:lo + head_dim], k_p[..., lo:lo + head_dim])
    attn_expect = jax.nn.softmax(s_ref, axis=-1) / num_heads
    out_expect = v_p @ wo.T

    np.testing.assert_allclose(np.asarray(out), np.asarray(out_expect),
                               rtol=1e-4, atol=1e-5)
    np.testing.assert_allclose(np.asarray(attn), np.asarray(attn_expect),
                               rtol=2e-3, atol=1e-5)
    print("KERNEL_OK")
</pallas_src>

<mosaic_0001>
module attributes {stable_mosaic.version = 11 : i64} {
  func.func @_out_proj_kernel(%arg0: i32, %arg1: memref<16x32xf32, #tpu.memory_space<vmem>>, %arg2: memref<32x32xf32, #tpu.memory_space<vmem>>, %arg3: memref<16x32xf32, #tpu.memory_space<vmem>>) attributes {dimension_semantics = [#tpu.dimension_semantics<parallel>], iteration_bounds = array<i64: 1>, scalar_prefetch = 0 : i64, scratch_operands = 0 : i64, tpu.core_type = #tpu.core_type<tc>, window_params = [{transform_indices = @transform_0, window_bounds = array<i64: 16, 32>}, {pipeline_mode = #tpu.pipeline_mode<synchronous>, transform_indices = @transform_1, window_bounds = array<i64: 32, 32>}, {transform_indices = @transform_2, window_bounds = array<i64: 16, 32>}]} {
    %c0 = arith.constant 0 : index
    %c0_0 = arith.constant 0 : index
    %0 = vector.load %arg1[%c0, %c0_0] : memref<16x32xf32, #tpu.memory_space<vmem>>, vector<16x32xf32>
    %c0_1 = arith.constant 0 : index
    %c0_2 = arith.constant 0 : index
    %1 = vector.load %arg2[%c0_1, %c0_2] : memref<32x32xf32, #tpu.memory_space<vmem>>, vector<32x32xf32>
    %cst = arith.constant dense<0.000000e+00> : vector<16x32xf32>
    %2 = tpu.matmul %0, %1, %cst {dimension_numbers = #tpu.dot_dimension_numbers<[1], [0], [0], [1], [0, 0, 1, 1], [], []>} : vector<16x32xf32>, vector<32x32xf32>, vector<16x32xf32> -> vector<16x32xf32>
    %c0_3 = arith.constant 0 : index
    %c0_4 = arith.constant 0 : index
    %3 = vector.load %arg3[%c0_3, %c0_4] : memref<16x32xf32, #tpu.memory_space<vmem>>, vector<16x32xf32>
    tpu.vector_store %arg3[%c0_3, %c0_4], %2 {strides = array<i32>} : memref<16x32xf32, #tpu.memory_space<vmem>>, vector<16x32xf32>,
    return
  }
  func.func @transform_0(%arg0: i32) -> (i32, i32) {
    %c0_i32 = arith.constant 0 : i32
    %c0_i32_0 = arith.constant 0 : i32
    return %arg0, %c0_i32 : i32, i32
  }
  func.func @transform_1(%arg0: i32) -> (i32, i32) {
    %c0_i32 = arith.constant 0 : i32
    %c0_i32_0 = arith.constant 0 : i32
    %c0_i32_1 = arith.constant 0 : i32
    return %c0_i32, %c0_i32_0 : i32, i32
  }
  func.func @transform_2(%arg0: i32) -> (i32, i32) {
    %c0_i32 = arith.constant 0 : i32
    %c0_i32_0 = arith.constant 0 : i32
    return %arg0, %c0_i32 : i32, i32
  }
}

</mosaic_0001>

<llo_original>
// kernel: tpu_custom_call.1
$region0: #{tpu_custom_call.1}
  #allocation0 [shape = 'u32[]', space=smem, size = 0x4, offset = 0x4, fixed_abs, tag = 'smem constant byte address 0x4 - core index']
  #allocation1 [shape = 'u32[144,128]{1,0:T(1,128)}', space=vmem, size = 0x12000, scoped, tag = 'internal scratch']
  %s0 = inlined_call_operand.hbm [shape: f32[16,32], index: 0, kind: input, shape index: {}]
  %s1 = inlined_call_operand.hbm [shape: f32[32,32], index: 1, kind: input, shape index: {}]
  %s2 = inlined_call_operand.hbm [shape: f32[16,32], index: 2, kind: output, shape index: {}]
  %s3 = sld [smem:[#allocation0]]
  $region26: #{tpu_custom_call.1} parent=0
    _
  %s5 = ssub.s32 1, %s3
  %s6 = scalar_select 0, %s5, %s3
  $region1: #{tpu_custom_call.1} parent=0
    #allocation2 [shape = 'u8[8192]{0}', space=vmem, size = 0x2000, scoped, tag = 'input window, operand 0, single buffered']
    #allocation3 [shape = 's32[1]{0}', space=sflag, size = 0x4, scoped, tag = 'scoped memory for tpu_custom_call.1']
    #allocation4 [shape = 's32[1]{0}', space=sflag, size = 0x4, scoped, tag = 'scoped memory for tpu_custom_call.1']
    #allocation5 [shape = 'u8[16384]{0}', space=vmem, size = 0x4000, scoped, tag = 'input window, operand 1, single buffered']
    #allocation6 [shape = 's32[1]{0}', space=sflag, size = 0x4, scoped, tag = 'scoped memory for tpu_custom_call.1']
    #allocation7 [shape = 'u8[8192]{0}', space=vmem, size = 0x2000, scoped, tag = 'output window, operand 0, single buffered']
    %7 = vsyncpa [#allocation3], 0
    %8 = vsyncpa [#allocation6], 0
    %9 = vsyncpa [#allocation4], 0
    // Predicated region
    $region2: #{tpu_custom_call.1} parent=1 // pred_check
      _
    $region3: #{tpu_custom_call.1} parent=1 // pred_check_branch
      %11 = sbr.rel (0) target = $region5
    $region4: #{tpu_custom_call.1} parent=1 // pred_region
      %s13 = ssub.s32 256, 256
      %14 = vsyncadd [#allocation3], %s13
      %s15 = sshll.u32 [#allocation2], 4
      %s16 = int_to_ptr.vmem [resolvable:$true] %s15
      %21 = dma.hbm_to_vmem [thread:$0]  %s0, 256, %s16, [#allocation3], 128, 128, 8
    $region5: #{tpu_custom_call.1} parent=1 // pred_fallthru
      _
    // Predicated region
    $region6: #{tpu_custom_call.1} parent=1 // pred_check
      _
    $region7: #{tpu_custom_call.1} parent=1 // pred_check_branch
      %23 = sbr.rel (0) target = $region9
    $region8: #{tpu_custom_call.1} parent=1 // pred_region
      %s25 = ssub.s32 512, 512
      %26 = vsyncadd [#allocation6], %s25
      %s27 = sshll.u32 [#allocation5], 4
      %s28 = int_to_ptr.vmem [resolvable:$true] %s27
      %33 = dma.hbm_to_vmem [thread:$0]  %s1, 512, %s28, [#allocation6], 128, 128, 8
    $region9: #{tpu_custom_call.1} parent=1 // pred_fallthru
      _
    // Predicated region
    $region10: #{tpu_custom_call.1} parent=1 // pred_check
      _
    $region11: #{tpu_custom_call.1} parent=1 // pred_check_branch
      %35 = sbr.rel (0) target = $region13
    $region12: #{tpu_custom_call.1} parent=1 // pred_region
      %36 = dma.done [#allocation3], 256
    $region13: #{tpu_custom_call.1} parent=1 // pred_fallthru
      _
    // Predicated region
    $region14: #{tpu_custom_call.1} parent=1 // pred_check
      _
    $region15: #{tpu_custom_call.1} parent=1 // pred_check_branch
      %38 = sbr.rel (0) target = $region17
    $region16: #{tpu_custom_call.1} parent=1 // pred_region
      %39 = dma.done [#allocation6], 512
    $region17: #{tpu_custom_call.1} parent=1 // pred_fallthru
      _
    %v40 = vld [vmem:[#allocation2] sm:$0xff]
    %v41 = vld [vmem:[#allocation2 + $0x8] sm:$0xff]
    %v42 = vld [vmem:[#allocation5] sm:$0xff]
    %v43 = vld [vmem:[#allocation5 + $0x8] sm:$0xff]
    %v44 = vld [vmem:[#allocation5 + $0x10] sm:$0xff]
    %v45 = vld [vmem:[#allocation5 + $0x18] sm:$0xff]
    %vm46 = vcmask 261120
    %v48 = vsel %vm46, %v40, 0
    %v51 = vsel %vm46, %v41, 0
    %53 = vmatprep.subr.mxu0 0.0
    %54 = vmatpush1.msra.mxu0 0.0
    %55 = vmatprep.subr.mxu0 0.0
    %56 = vmatpush1.msra.mxu0 0.0
    %57 = vmatprep.subr.mxu0 0.0
    %58 = vmatpush1.msra.mxu0 0.0
    %59 = vmatprep.subr.mxu0 0.0
    %60 = vmatpush1.msra.mxu0 0.0
    %61 = vmatprep.subr.mxu0 0.0
    %62 = vmatpush1.msra.mxu0 0.0
    %63 = vmatprep.subr.mxu0 0.0
    %64 = vmatpush1.msra.mxu0 0.0
    %65 = vmatprep.subr.mxu0 0.0
    %66 = vmatpush1.msra.mxu0 0.0
    %67 = vmatprep.subr.mxu0 0.0
    %68 = vmatpush1.msra.mxu0 0.0
    %69 = vmatprep.subr.mxu0 0.0
    %70 = vmatpush1.msra.mxu0 0.0
    %71 = vmatprep.subr.mxu0 0.0
    %72 = vmatpush1.msra.mxu0 0.0
    %73 = vmatprep.subr.mxu0 0.0
    %74 = vmatpush1.msra.mxu0 0.0
    %75 = vmatprep.subr.mxu0 0.0
    %76 = vmatpush1.msra.mxu0 0.0
    %77 = vmatprep.subr.mxu0 0.0
    %78 = vmatpush1.msra.mxu0 %v45
    %79 = vmatprep.subr.mxu0 0.0
    %80 = vmatpush1.msra.mxu0 %v44
    %81 = vmatprep.subr.mxu0 0.0
    %82 = vmatpush1.msra.mxu0 %v43
    %83 = vmatprep.subr.mxu0 0.0
    %84 = vmatpush1.msra.mxu0 %v42
    %85 = vmatprep.subr.mxu0 0.0
    %86 = vmatpush2.msra.mxu0 0.0
    %87 = vmatprep.subr.mxu0 0.0
    %88 = vmatpush2.msra.mxu0 0.0
    %89 = vmatprep.subr.mxu0 0.0
    %90 = vmatpush2.msra.mxu0 0.0
    %91 = vmatprep.subr.mxu0 0.0
    %92 = vmatpush2.msra.mxu0 0.0
    %93 = vmatprep.subr.mxu0 0.0
    %94 = vmatpush2.msra.mxu0 0.0
    %95 = vmatprep.subr.mxu0 0.0
    %96 = vmatpush2.msra.mxu0 0.0
    %97 = vmatprep.subr.mxu0 0.0
    %98 = vmatpush2.msra.mxu0 0.0
    %99 = vmatprep.subr.mxu0 0.0
    %100 = vmatpush2.msra.mxu0 0.0
    %101 = vmatprep.subr.mxu0 0.0
    %102 = vmatpush2.msra.mxu0 0.0
    %103 = vmatprep.subr.mxu0 0.0
    %104 = vmatpush2.msra.mxu0 0.0
    %105 = vmatprep.subr.mxu0 0.0
    %106 = vmatpush2.msra.mxu0 0.0
    %107 = vmatprep.subr.mxu0 0.0
    %108 = vmatpush2.msra.mxu0 0.0
    %109 = vmatprep.subr.mxu0 0.0
    %110 = vmatpush2.msra.mxu0 0.0
    %111 = vmatprep.subr.mxu0 0.0
    %112 = vmatpush2.msra.mxu0 0.0
    %113 = vmatprep.subr.mxu0 0.0
    %114 = vmatpush2.msra.mxu0 0.0
    %115 = vmatprep.subr.mxu0 0.0
    %116 = vmatpush2.msra.mxu0 0.0
    %117 = vmatprep.mubr.f32.mxu0 0.0
    %118 = vmatmul.mubr.f32.gmra.mxu0 %v48
    %v119 = vpop.f32.mrf.mxu0
    %v120 = vadd.f32 0.0, %v119
    %v121 = vpop.f32.mrf.mxu0
    %122 = vmatprep.mubr.f32.mxu0 0.0
    %123 = vmatmul.mubr.f32.gmra.mxu0 %v51
    %v124 = vpop.f32.mrf.mxu0
    %v125 = vadd.f32 0.0, %v124
    %v126 = vpop.f32.mrf.mxu0
    %127 = vdwg.mxu0
    %128 = vst.msk [vmem:[#allocation7] sm:$0xff] %vm46, %v120
    %129 = vst.msk [vmem:[#allocation7 + $0x8] sm:$0xff] %vm46, %v125
    // Predicated region
    $region18: #{tpu_custom_call.1} parent=1 // pred_check
      _
    $region19: #{tpu_custom_call.1} parent=1 // pred_check_branch
      %131 = sbr.rel (0) target = $region21
    $region20: #{tpu_custom_call.1} parent=1 // pred_region
      %s133 = ssub.s32 256, 256
      %134 = vsyncadd [#allocation4], %s133
      %s135 = sshll.u32 [#allocation7], 4
      %s136 = int_to_ptr.vmem [resolvable:$true] %s135
      %141 = dma.vmem_to_hbm [thread:$0]  %s136, 256, %s2, [#allocation4], 128, 128, 8
    $region21: #{tpu_custom_call.1} parent=1 // pred_fallthru
      _
    // Predicated region
    $region22: #{tpu_custom_call.1} parent=1 // pred_check
      _
    $region23: #{tpu_custom_call.1} parent=1 // pred_check_branch
      %143 = sbr.rel (0) target = $region25
    $region24: #{tpu_custom_call.1} parent=1 // pred_region
      %144 = dma.done [#allocation4], 256
    $region25: #{tpu_custom_call.1} parent=1 // pred_fallthru
      _
    %145 = vsyncpa [#allocation3], 1
    %146 = vsyncpa [#allocation6], 1
    %147 = vsyncpa [#allocation4], 1

</llo_original>
